<compile_context>
chip_gen: v6e
topology: v6e:2x2x1
jax: 0.10.0
libtpu: 0.0.40
codegen_flags: <defaults>
</compile_context>

<pallas_src>
import functools

import jax
import jax.numpy as jnp
from jax.experimental import pallas as pl
from jax.experimental.pallas import tpu as pltpu

LANE = 128


def _round_up(x, m):
    return (x + m - 1) // m * m


def _cdiv(a, b):
    return (a + b - 1) // b


# ---------------------------------------------------------------------------
# Pallas kernel: fused 3-layer MLP + per-row buchi gather
# ---------------------------------------------------------------------------
def _dqn_kernel(x_ref, bidx_ref, w1_ref, b1_ref, w2_ref, b2_ref, w3_ref,
                b3_ref, o_ref, *, n_buchi, n_act, compute_dtype):
    c = compute_dtype
    x = x_ref[...].astype(c)
    # Weights arrive already in the compute dtype (pre-cast once, outside).
    h = jnp.dot(x, w1_ref[...], preferred_element_type=jnp.float32) + b1_ref[...]
    h = jnp.maximum(h, 0.0)                                   # f32 ReLU
    h = jnp.dot(h.astype(c), w2_ref[...],
                preferred_element_type=jnp.float32) + b2_ref[...]
    h = jnp.maximum(h, 0.0)
    q = jnp.dot(h.astype(c), w3_ref[...],
                preferred_element_type=jnp.float32) + b3_ref[...]   # [TB, 128]

    # Fused torch.take_along_dim(all_qs, buchi, dim=1): per-row, select the
    # n_act-wide column block belonging to that row's buchi state.
    bidx = bidx_ref[...]                                      # [TB, 1] int32
    out = q[:, 0:n_act]
    for g in range(1, n_buchi):
        out = jnp.where(bidx == g, q[:, g * n_act:(g + 1) * n_act], out)
    o_ref[...] = out.astype(o_ref.dtype)


def _choose_tile(Bp, batch_tile, sublane):
    if Bp <= 2 * sublane:
        return Bp                       # too small to usefully split
    if Bp <= 2 * batch_tile:
        # >= 2 grid steps so both v7x TensorCores get a tile (sublane aligned).
        return min(batch_tile, _round_up(_cdiv(Bp, 2), sublane))
    return batch_tile


def dqn_qs_pallas(state, buchi_idx, padded_params, *, n_buchi, n_act,
                  compute_dtype=jnp.bfloat16, batch_tile=1024):
    """Fused actor-MLP + buchi gather.  state: [B, envsize] f32,
    buchi_idx: [B] int32.  Returns [B, n_act] f32."""
    w1, b1, w2, b2, w3, b3 = padded_params
    B, envsize = state.shape

    sublane = 16 if compute_dtype == jnp.bfloat16 else 8
    Bp = _round_up(B, sublane)
    if Bp != B:
        state = jnp.pad(state, ((0, Bp - B), (0, 0)))
        buchi_idx = jnp.pad(buchi_idx, ((0, Bp - B),))
    buchi_col = buchi_idx.reshape(Bp, 1).astype(jnp.int32)

    TB = _choose_tile(Bp, batch_tile, sublane)
    grid = (_cdiv(Bp, TB),)             # ragged last block; OOB rows dropped

    def const_spec(a):
        # Weights/biases: same block every grid step -> stay VMEM-resident.
        return pl.BlockSpec(a.shape, lambda i: (0,) * a.ndim)

    kernel = functools.partial(_dqn_kernel, n_buchi=n_buchi, n_act=n_act,
                               compute_dtype=compute_dtype)
    out = pl.pallas_call(
        kernel,
        out_shape=jax.ShapeDtypeStruct((Bp, n_act), jnp.float32),
        grid=grid,
        in_specs=[
            pl.BlockSpec((TB, envsize), lambda i: (i, 0)),
            pl.BlockSpec((TB, 1), lambda i: (i, 0)),
            const_spec(w1), const_spec(b1),
            const_spec(w2), const_spec(b2),
            const_spec(w3), const_spec(b3),
        ],
        out_specs=pl.BlockSpec((TB, n_act), lambda i: (i, 0)),
        compiler_params=pltpu.CompilerParams(
            dimension_semantics=("parallel",)),
    )(state, buchi_col, w1, b1, w2, b2, w3, b3)
    return out[:B]


# ---------------------------------------------------------------------------
# DQN module equivalent
# ---------------------------------------------------------------------------
def init_dqn_params(key, envsize, n_buchi, n_act_total, hidden=64):
    """Deterministic init matching nn.Linear default (uniform +/- 1/sqrt(fan_in)).
    Weights stored as [in, out] so the kernel computes x @ W + b."""
    dims = [(envsize, hidden), (hidden, hidden), (hidden, n_buchi * n_act_total)]
    params = []
    for fan_in, fan_out in dims:
        key, kw, kb = jax.random.split(key, 3)
        bound = 1.0 / jnp.sqrt(fan_in)
        w = jax.random.uniform(kw, (fan_in, fan_out), jnp.float32, -bound, bound)
        b = jax.random.uniform(kb, (1, fan_out), jnp.float32, -bound, bound)
        params += [w, b]
    return tuple(params)


def pad_params_for_kernel(params, compute_dtype=jnp.bfloat16):
    """Zero-pad hidden / output feature dims to 128 lanes and pre-cast the
    weights to the MXU compute dtype (biases stay f32).  Exact padding."""
    w1, b1, w2, b2, w3, b3 = params
    hidden = w1.shape[1]
    out_dim = w3.shape[1]
    hp = _round_up(max(hidden, LANE), LANE)
    op = _round_up(out_dim, LANE)
    w1p = jnp.pad(w1, ((0, 0), (0, hp - hidden))).astype(compute_dtype)
    b1p = jnp.pad(b1, ((0, 0), (0, hp - hidden)))
    w2p = jnp.pad(w2, ((0, hp - hidden), (0, hp - hidden))).astype(compute_dtype)
    b2p = jnp.pad(b2, ((0, 0), (0, hp - hidden)))
    w3p = jnp.pad(w3, ((0, hp - hidden), (0, op - out_dim))).astype(compute_dtype)
    b3p = jnp.pad(b3, ((0, 0), (0, op - out_dim)))
    return (w1p, b1p, w2p, b2p, w3p, b3p)


def build_mask(n_buchi, n_act_total, n_mdp_actions):
    """Replicates DQN.__init__ mask construction (no per-buchi eps actions)."""
    mask = jnp.ones((n_buchi, n_act_total), dtype=jnp.bool_)
    if n_act_total != n_mdp_actions:
        eps = 1
        col = jnp.arange(n_act_total)
        mask = jnp.broadcast_to(col < eps, (n_buchi, n_act_total))
    return mask


def _actor_jax(state, padded_params, compute_dtype):
    """Pure-JAX actor for tiny batches (same padded params / dtype policy)."""
    w1, b1, w2, b2, w3, b3 = padded_params
    c = compute_dtype
    h = jnp.maximum(jnp.dot(state.astype(c), w1,
                            preferred_element_type=jnp.float32) + b1, 0.0)
    h = jnp.maximum(jnp.dot(h.astype(c), w2,
                            preferred_element_type=jnp.float32) + b2, 0.0)
    return jnp.dot(h.astype(c), w3, preferred_element_type=jnp.float32) + b3


def dqn_forward(padded_params, mask, shp, state, buchi, to_mask=True,
                compute_dtype=jnp.bfloat16, small_batch_threshold=64,
                force_pallas=False, batch_tile=1024):
    """Equivalent of DQN.forward.

    state: [B, envsize] f32; buchi: [B, 1, 1] int32.
    Returns (qs, valid_mask) if to_mask else qs, with qs shaped like
    torch.take_along_dim(all_qs, buchi, dim=1).squeeze().
    """
    n_buchi, n_act = shp
    B = state.shape[0]
    b_idx = buchi.reshape((B,)).astype(jnp.int32)

    if force_pallas or B > small_batch_threshold:
        qs = dqn_qs_pallas(state, b_idx, padded_params, n_buchi=n_buchi,
                           n_act=n_act, compute_dtype=compute_dtype,
                           batch_tile=batch_tile)              # [B, n_act]
    else:
        # Launch overhead dominates tiny action-selection batches; use XLA.
        all_qs = _actor_jax(state, padded_params, compute_dtype)
        all_qs = all_qs[:, :n_buchi * n_act].reshape((B, n_buchi, n_act))
        qs = all_qs[jnp.arange(B), b_idx, :]

    qs = jnp.squeeze(qs)   # matches torch .squeeze(); collapses batch if B==1
    if to_mask:
        # TODO(synk): torch.masked.MaskedTensor has no JAX equivalent; return
        # the gathered boolean mask alongside qs instead of a masked tensor.
        m = jnp.squeeze(mask[b_idx])
        return qs, m
    return qs


def _ref_actor(state, params, compute_dtype):
    """Pure-JAX reference on unpadded params, same operand-dtype policy."""
    w1, b1, w2, b2, w3, b3 = params
    c = compute_dtype
    h = jnp.maximum(jnp.dot(state.astype(c), w1.astype(c),
                            preferred_element_type=jnp.float32) + b1, 0.0)
    h = jnp.maximum(jnp.dot(h.astype(c), w2.astype(c),
                            preferred_element_type=jnp.float32) + b2, 0.0)
    return jnp.dot(h.astype(c), w3.astype(c),
                   preferred_element_type=jnp.float32) + b3


def _pick_compute_dtype():
    # bf16 MXU operands on all TPU generations (v5e MXU is natively bf16;
    # bias-add / ReLU stay f32 in-kernel so no bf16 VPU ops are needed).
    try:
        plat = jax.devices()[0].platform
    except Exception:
        return jnp.float32
    return jnp.bfloat16 if plat == "tpu" else jnp.float32


if __name__ == "__main__":
    # Small synthetic config consistent with the module:
    #   env_space['mdp'].shape = (4,)  -> envsize = 4
    #   env_space['buchi'].n   = 3
    #   act_space['total']     = 5, act_space['mdp'].n = 4
    envsize, n_buchi, n_act_total, n_mdp_actions = 4, 3, 5, 4
    shp = (n_buchi, n_act_total)

    key = jax.random.PRNGKey(0)
    k_param, k_state, k_buchi, k_state2, k_buchi2 = jax.random.split(key, 5)

    params = init_dqn_params(k_param, envsize, n_buchi, n_act_total)
    compute_dtype = _pick_compute_dtype()
    padded_params = pad_params_for_kernel(params, compute_dtype)
    mask = build_mask(n_buchi, n_act_total, n_mdp_actions)
    tol = 1e-5 if compute_dtype == jnp.float32 else 2e-2

    # --- small forward (B=2), force the Pallas kernel so it runs at tiny shapes
    batch = 2
    state = jax.random.normal(k_state, (batch, envsize), jnp.float32)
    buchi = jax.random.randint(k_buchi, (batch, 1, 1), 0, n_buchi, jnp.int32)

    qs, valid = dqn_forward(padded_params, mask, shp, state, buchi,
                            to_mask=True, compute_dtype=compute_dtype,
                            force_pallas=True)
    jax.block_until_ready((qs, valid))

    ref_all = _ref_actor(state, params, compute_dtype).reshape(
        (batch, n_buchi, n_act_total))
    ref_qs = jnp.squeeze(ref_all[jnp.arange(batch), buchi.reshape(batch), :])
    assert jnp.allclose(qs, ref_qs, atol=tol, rtol=tol), "mismatch (B=2, pallas)"
    ref_m = jnp.squeeze(mask[buchi.reshape(batch)])
    assert jnp.array_equal(valid, ref_m), "mask mismatch (B=2)"

    # --- same small batch through the auto-dispatch (pure-JAX) path
    qs_small = dqn_forward(padded_params, mask, shp, state, buchi,
                           to_mask=False, compute_dtype=compute_dtype)
    jax.block_until_ready(qs_small)
    assert jnp.allclose(qs_small, ref_qs, atol=tol, rtol=tol), "mismatch (B=2, jax)"

    # --- multi-tile batch (B=300): ragged last tile, 2 parallel grid steps,
    #     fused in-kernel buchi gather.
    big_b = 300
    state2 = jax.random.normal(k_state2, (big_b, envsize), jnp.float32)
    buchi2 = jax.random.randint(k_buchi2, (big_b, 1, 1), 0, n_buchi, jnp.int32)
    qs2 = dqn_forward(padded_params, mask, shp, state2, buchi2, to_mask=False,
                      compute_dtype=compute_dtype)
    jax.block_until_ready(qs2)

    ref_all2 = _ref_actor(state2, params, compute_dtype).reshape(
        (big_b, n_buchi, n_act_total))
    ref_qs2 = jnp.squeeze(ref_all2[jnp.arange(big_b), buchi2.reshape(big_b), :])
    assert jnp.allclose(qs2, ref_qs2, atol=tol, rtol=tol), "mismatch (B=300, pallas)"

    print("KERNEL_OK")
</pallas_src>

<mosaic_0001>
module attributes {stable_mosaic.version = 11 : i64} {
  func.func @_dqn_kernel(%arg0: i32, %arg1: memref<8x4xf32, #tpu.memory_space<vmem>>, %arg2: memref<8x1xi32, #tpu.memory_space<vmem>>, %arg3: memref<4x128xf32, #tpu.memory_space<vmem>>, %arg4: memref<1x128xf32, #tpu.memory_space<vmem>>, %arg5: memref<128x128xf32, #tpu.memory_space<vmem>>, %arg6: memref<1x128xf32, #tpu.memory_space<vmem>>, %arg7: memref<128x128xf32, #tpu.memory_space<vmem>>, %arg8: memref<1x128xf32, #tpu.memory_space<vmem>>, %arg9: memref<8x5xf32, #tpu.memory_space<vmem>>) attributes {dimension_semantics = [#tpu.dimension_semantics<parallel>], iteration_bounds = array<i64: 1>, scalar_prefetch = 0 : i64, scratch_operands = 0 : i64, tpu.core_type = #tpu.core_type<tc>, window_params = [{transform_indices = @transform_0, window_bounds = array<i64: 8, 4>}, {transform_indices = @transform_1, window_bounds = array<i64: 8, 1>}, {pipeline_mode = #tpu.pipeline_mode<synchronous>, transform_indices = @transform_2, window_bounds = array<i64: 4, 128>}, {pipeline_mode = #tpu.pipeline_mode<synchronous>, transform_indices = @transform_3, window_bounds = array<i64: 1, 128>}, {pipeline_mode = #tpu.pipeline_mode<synchronous>, transform_indices = @transform_4, window_bounds = array<i64: 128, 128>}, {pipeline_mode = #tpu.pipeline_mode<synchronous>, transform_indices = @transform_5, window_bounds = array<i64: 1, 128>}, {pipeline_mode = #tpu.pipeline_mode<synchronous>, transform_indices = @transform_6, window_bounds = array<i64: 128, 128>}, {pipeline_mode = #tpu.pipeline_mode<synchronous>, transform_indices = @transform_7, window_bounds = array<i64: 1, 128>}, {transform_indices = @transform_8, window_bounds = array<i64: 8, 5>}]} {
    %c0 = arith.constant 0 : index
    %c0_0 = arith.constant 0 : index
    %0 = vector.load %arg1[%c0, %c0_0] : memref<8x4xf32, #tpu.memory_space<vmem>>, vector<8x4xf32>
    %c0_1 = arith.constant 0 : index
    %c0_2 = arith.constant 0 : index
    %1 = vector.load %arg3[%c0_1, %c0_2] : memref<4x128xf32, #tpu.memory_space<vmem>>, vector<4x128xf32>
    %cst = arith.constant dense<0.000000e+00> : vector<8x128xf32>
    %2 = tpu.matmul %0, %1, %cst {dimension_numbers = #tpu.dot_dimension_numbers<[1], [0], [0], [1], [0, 0, 1, 1], [], []>} : vector<8x4xf32>, vector<4x128xf32>, vector<8x128xf32> -> vector<8x128xf32>
    %c0_3 = arith.constant 0 : index
    %c0_4 = arith.constant 0 : index
    %3 = vector.load %arg4[%c0_3, %c0_4] : memref<1x128xf32, #tpu.memory_space<vmem>>, vector<1x128xf32>
    %4 = vector.broadcast %3 : vector<1x128xf32> to vector<8x128xf32>
    %5 = arith.addf %2, %4 : vector<8x128xf32>
    %cst_5 = arith.constant 0.000000e+00 : f32
    %6 = vector.broadcast %cst_5 : f32 to vector<8x128xf32>
    %7 = arith.maximumf %5, %6 : vector<8x128xf32>
    %c0_6 = arith.constant 0 : index
    %c0_7 = arith.constant 0 : index
    %8 = vector.load %arg5[%c0_6, %c0_7] : memref<128x128xf32, #tpu.memory_space<vmem>>, vector<128x128xf32>
    %cst_8 = arith.constant dense<0.000000e+00> : vector<8x128xf32>
    %9 = tpu.matmul %7, %8, %cst_8 {dimension_numbers = #tpu.dot_dimension_numbers<[1], [0], [0], [1], [0, 0, 1, 1], [], []>} : vector<8x128xf32>, vector<128x128xf32>, vector<8x128xf32> -> vector<8x128xf32>
    %c0_9 = arith.constant 0 : index
    %c0_10 = arith.constant 0 : index
    %10 = vector.load %arg6[%c0_9, %c0_10] : memref<1x128xf32, #tpu.memory_space<vmem>>, vector<1x128xf32>
    %11 = vector.broadcast %10 : vector<1x128xf32> to vector<8x128xf32>
    %12 = arith.addf %9, %11 : vector<8x128xf32>
    %cst_11 = arith.constant 0.000000e+00 : f32
    %13 = vector.broadcast %cst_11 : f32 to vector<8x128xf32>
    %14 = arith.maximumf %12, %13 : vector<8x128xf32>
    %c0_12 = arith.constant 0 : index
    %c0_13 = arith.constant 0 : index
    %15 = vector.load %arg7[%c0_12, %c0_13] : memref<128x128xf32, #tpu.memory_space<vmem>>, vector<128x128xf32>
    %cst_14 = arith.constant dense<0.000000e+00> : vector<8x128xf32>
    %16 = tpu.matmul %14, %15, %cst_14 {dimension_numbers = #tpu.dot_dimension_numbers<[1], [0], [0], [1], [0, 0, 1, 1], [], []>} : vector<8x128xf32>, vector<128x128xf32>, vector<8x128xf32> -> vector<8x128xf32>
    %c0_15 = arith.constant 0 : index
    %c0_16 = arith.constant 0 : index
    %17 = vector.load %arg8[%c0_15, %c0_16] : memref<1x128xf32, #tpu.memory_space<vmem>>, vector<1x128xf32>
    %18 = vector.broadcast %17 : vector<1x128xf32> to vector<8x128xf32>
    %19 = arith.addf %16, %18 : vector<8x128xf32>
    %c0_17 = arith.constant 0 : index
    %c0_18 = arith.constant 0 : index
    %20 = vector.load %arg2[%c0_17, %c0_18] : memref<8x1xi32, #tpu.memory_space<vmem>>, vector<8x1xi32>
    %21 = vector.extract_strided_slice %19 {offsets = [0, 0], sizes = [8, 5], strides = [1, 1]} : vector<8x128xf32> to vector<8x5xf32>
    %c1_i32 = arith.constant 1 : i32
    %22 = vector.broadcast %c1_i32 : i32 to vector<8x1xi32>
    %23 = arith.cmpi eq, %20, %22 : vector<8x1xi32>
    %24 = vector.extract_strided_slice %19 {offsets = [0, 5], sizes = [8, 5], strides = [1, 1]} : vector<8x128xf32> to vector<8x5xf32>
    %25 = vector.shape_cast %23 : vector<8x1xi1> to vector<8x1xi1>
    %26 = vector.broadcast %25 : vector<8x1xi1> to vector<8x5xi1>
    %27 = arith.select %26, %24, %21 : vector<8x5xi1>, vector<8x5xf32>
    %c2_i32 = arith.constant 2 : i32
    %28 = vector.broadcast %c2_i32 : i32 to vector<8x1xi32>
    %29 = arith.cmpi eq, %20, %28 : vector<8x1xi32>
    %30 = vector.extract_strided_slice %19 {offsets = [0, 10], sizes = [8, 5], strides = [1, 1]} : vector<8x128xf32> to vector<8x5xf32>
    %31 = vector.shape_cast %29 : vector<8x1xi1> to vector<8x1xi1>
    %32 = vector.broadcast %31 : vector<8x1xi1> to vector<8x5xi1>
    %33 = arith.select %32, %30, %27 : vector<8x5xi1>, vector<8x5xf32>
    %c0_19 = arith.constant 0 : index
    %c0_20 = arith.constant 0 : index
    %34 = vector.load %arg9[%c0_19, %c0_20] : memref<8x5xf32, #tpu.memory_space<vmem>>, vector<8x5xf32>
    tpu.vector_store %arg9[%c0_19, %c0_20], %33 {strides = array<i32>} : memref<8x5xf32, #tpu.memory_space<vmem>>, vector<8x5xf32>,
    return
  }
  func.func @transform_0(%arg0: i32) -> (i32, i32) {
    %c0_i32 = arith.constant 0 : i32
    %c0_i32_0 = arith.constant 0 : i32
    return %arg0, %c0_i32 : i32, i32
  }
  func.func @transform_1(%arg0: i32) -> (i32, i32) {
    %c0_i32 = arith.constant 0 : i32
    %c0_i32_0 = arith.constant 0 : i32
    return %arg0, %c0_i32 : i32, i32
  }
  func.func @transform_2(%arg0: i32) -> (i32, i32) {
    %c0_i32 = arith.constant 0 : i32
    %c0_i32_0 = arith.constant 0 : i32
    %c0_i32_1 = arith.constant 0 : i32
    return %c0_i32, %c0_i32_0 : i32, i32
  }
  func.func @transform_3(%arg0: i32) -> (i32, i32) {
    %c0_i32 = arith.constant 0 : i32
    %c0_i32_0 = arith.constant 0 : i32
    %c0_i32_1 = arith.constant 0 : i32
    return %c0_i32, %c0_i32_0 : i32, i32
  }
  func.func @transform_4(%arg0: i32) -> (i32, i32) {
    %c0_i32 = arith.constant 0 : i32
    %c0_i32_0 = arith.constant 0 : i32
    %c0_i32_1 = arith.constant 0 : i32
    return %c0_i32, %c0_i32_0 : i32, i32
  }
  func.func @transform_5(%arg0: i32) -> (i32, i32) {
    %c0_i32 = arith.constant 0 : i32
    %c0_i32_0 = arith.constant 0 : i32
    %c0_i32_1 = arith.constant 0 : i32
    return %c0_i32, %c0_i32_0 : i32, i32
  }
  func.func @transform_6(%arg0: i32) -> (i32, i32) {
    %c0_i32 = arith.constant 0 : i32
    %c0_i32_0 = arith.constant 0 : i32
    %c0_i32_1 = arith.constant 0 : i32
    return %c0_i32, %c0_i32_0 : i32, i32
  }
  func.func @transform_7(%arg0: i32) -> (i32, i32) {
    %c0_i32 = arith.constant 0 : i32
    %c0_i32_0 = arith.constant 0 : i32
    %c0_i32_1 = arith.constant 0 : i32
    return %c0_i32, %c0_i32_0 : i32, i32
  }
  func.func @transform_8(%arg0: i32) -> (i32, i32) {
    %c0_i32 = arith.constant 0 : i32
    %c0_i32_0 = arith.constant 0 : i32
    return %arg0, %c0_i32 : i32, i32
  }
}

</mosaic_0001>

<llo_original>
// kernel: tpu_custom_call.1
$region0: #{tpu_custom_call.1}
  #allocation0 [shape = 'u32[]', space=smem, size = 0x4, offset = 0x4, fixed_abs, tag = 'smem constant byte address 0x4 - core index']
  #allocation1 [shape = 'u32[144,128]{1,0:T(1,128)}', space=vmem, size = 0x12000, scoped, tag = 'internal scratch']
  %s0 = inlined_call_operand.vmem [shape: f32[8,4], index: 0, kind: input, shape index: {}]
  %s1 = inlined_call_operand.vmem [shape: s32[8,1], index: 1, kind: input, shape index: {}]
  %s2 = inlined_call_operand.vmem [shape: f32[4,128], index: 2, kind: input, shape index: {}]
  %s3 = inlined_call_operand.vmem [shape: f32[1,128], index: 3, kind: input, shape index: {}]
  %s4 = inlined_call_operand.hbm [shape: f32[128,128], index: 4, kind: input, shape index: {}]
  %s5 = inlined_call_operand.vmem [shape: f32[1,128], index: 5, kind: input, shape index: {}]
  %s6 = inlined_call_operand.hbm [shape: f32[128,128], index: 6, kind: input, shape index: {}]
  %s7 = inlined_call_operand.vmem [shape: f32[1,128], index: 7, kind: input, shape index: {}]
  %s8 = inlined_call_operand.hbm [shape: f32[8,5], index: 8, kind: output, shape index: {}]
  %s9 = sld [smem:[#allocation0]]
  $region50: #{tpu_custom_call.1} parent=0
    _
  %s11 = ssub.s32 1, %s9
  %s12 = scalar_select 0, %s11, %s9
  $region1: #{tpu_custom_call.1} parent=0
    #allocation2 [shape = 'u8[65536]{0}', space=vmem, size = 0x10000, scoped, tag = 'input window, operand 4, single buffered']
    #allocation3 [shape = 's32[1]{0}', space=sflag, size = 0x4, scoped, tag = 'scoped memory for tpu_custom_call.1']
    #allocation4 [shape = 's32[1]{0}', space=sflag, size = 0x4, scoped, tag = 'scoped memory for tpu_custom_call.1']
    #allocation5 [shape = 'u8[65536]{0}', space=vmem, size = 0x10000, scoped, tag = 'input window, operand 6, single buffered']
    #allocation6 [shape = 's32[1]{0}', space=sflag, size = 0x4, scoped, tag = 'scoped memory for tpu_custom_call.1']
    #allocation7 [shape = 'u8[4096]{0}', space=vmem, size = 0x1000, scoped, tag = 'output window, operand 0, single buffered']
    %13 = vsyncpa [#allocation3], 0
    %14 = vsyncpa [#allocation6], 0
    %15 = vsyncpa [#allocation4], 0
    // Predicated region
    $region2: #{tpu_custom_call.1} parent=1 // pred_check
      _
    $region3: #{tpu_custom_call.1} parent=1 // pred_check_branch
      %17 = sbr.rel (0) target = $region5
    $region4: #{tpu_custom_call.1} parent=1 // pred_region
      _
    $region5: #{tpu_custom_call.1} parent=1 // pred_fallthru
      _
    // Predicated region
    $region6: #{tpu_custom_call.1} parent=1 // pred_check
      _
    $region7: #{tpu_custom_call.1} parent=1 // pred_check_branch
      %19 = sbr.rel (0) target = $region9
    $region8: #{tpu_custom_call.1} parent=1 // pred_region
      _
    $region9: #{tpu_custom_call.1} parent=1 // pred_fallthru
      _
    // Predicated region
    $region10: #{tpu_custom_call.1} parent=1 // pred_check
      _
    $region11: #{tpu_custom_call.1} parent=1 // pred_check_branch
      %21 = sbr.rel (0) target = $region13
    $region12: #{tpu_custom_call.1} parent=1 // pred_region
      _
    $region13: #{tpu_custom_call.1} parent=1 // pred_fallthru
      _
    // Predicated region
    $region14: #{tpu_custom_call.1} parent=1 // pred_check
      _
    $region15: #{tpu_custom_call.1} parent=1 // pred_check_branch
      %23 = sbr.rel (0) target = $region17
    $region16: #{tpu_custom_call.1} parent=1 // pred_region
      _
    $region17: #{tpu_custom_call.1} parent=1 // pred_fallthru
      _
    // Predicated region
    $region18: #{tpu_custom_call.1} parent=1 // pred_check
      _
    $region19: #{tpu_custom_call.1} parent=1 // pred_check_branch
      %25 = sbr.rel (0) target = $region21
    $region20: #{tpu_custom_call.1} parent=1 // pred_region
      %s27 = ssub.s32 2048, 2048
      %28 = vsyncadd [#allocation3], %s27
      %s29 = sshll.u32 [#allocation2], 4
      %s30 = int_to_ptr.vmem [resolvable:$true] %s29
      %35 = dma.hbm_to_vmem [thread:$0]  %s4, 2048, %s30, [#allocation3], 128, 128, 8
    $region21: #{tpu_custom_call.1} parent=1 // pred_fallthru
      _
    // Predicated region
    $region22: #{tpu_custom_call.1} parent=1 // pred_check
      _
    $region23: #{tpu_custom_call.1} parent=1 // pred_check_branch
      %37 = sbr.rel (0) target = $region25
    $region24: #{tpu_custom_call.1} parent=1 // pred_region
      _
    $region25: #{tpu_custom_call.1} parent=1 // pred_fallthru
      _
    // Predicated region
    $region26: #{tpu_custom_call.1} parent=1 // pred_check
      _
    $region27: #{tpu_custom_call.1} parent=1 // pred_check_branch
      %39 = sbr.rel (0) target = $region29
    $region28: #{tpu_custom_call.1} parent=1 // pred_region
      %s41 = ssub.s32 2048, 2048
      %42 = vsyncadd [#allocation6], %s41
      %s43 = sshll.u32 [#allocation5], 4
      %s44 = int_to_ptr.vmem [resolvable:$true] %s43
      %49 = dma.hbm_to_vmem [thread:$0]  %s6, 2048, %s44, [#allocation6], 128, 128, 8
    $region29: #{tpu_custom_call.1} parent=1 // pred_fallthru
      _
    // Predicated region
    $region30: #{tpu_custom_call.1} parent=1 // pred_check
      _
    $region31: #{tpu_custom_call.1} parent=1 // pred_check_branch
      %51 = sbr.rel (0) target = $region33
    $region32: #{tpu_custom_call.1} parent=1 // pred_region
      _
    $region33: #{tpu_custom_call.1} parent=1 // pred_fallthru
      _
    // Predicated region
    $region34: #{tpu_custom_call.1} parent=1 // pred_check
      _
    $region35: #{tpu_custom_call.1} parent=1 // pred_check_branch
      %53 = sbr.rel (0) target = $region37
    $region36: #{tpu_custom_call.1} parent=1 // pred_region
      %54 = dma.done [#allocation3], 2048
    $region37: #{tpu_custom_call.1} parent=1 // pred_fallthru
      _
    // Predicated region
    $region38: #{tpu_custom_call.1} parent=1 // pred_check
      _
    $region39: #{tpu_custom_call.1} parent=1 // pred_check_branch
      %56 = sbr.rel (0) target = $region41
    $region40: #{tpu_custom_call.1} parent=1 // pred_region
      %57 = dma.done [#allocation6], 2048
    $region41: #{tpu_custom_call.1} parent=1 // pred_fallthru
      _
    %v58 = vld [vmem:[%s0] sm:$0xff]
    %v59 = vld [vmem:[%s2] sm:$0xf]
    %v60 = vld [vmem:[%s3] sm:$0x1]
    %v62 = vlaneseq
    %v63 = vshrl.u32 %v62, 7
    %v64 = vsub.s32 0, %v63
    %v65 = vrot.slane %v60, %v64
    %vm67 = vcmask 31744
    %v69 = vsel %vm67, %v58, 0
    %vm71 = vcmask 1043456
    %v73 = vsel %vm71, %v59, 0
    %75 = vmatprep.subr.mxu0 0.0
    %76 = vmatpush1.msra.mxu0 0.0
    %77 = vmatprep.subr.mxu0 0.0
    %78 = vmatpush1.msra.mxu0 0.0
    %79 = vmatprep.subr.mxu0 0.0
    %80 = vmatpush1.msra.mxu0 0.0
    %81 = vmatprep.subr.mxu0 0.0
    %82 = vmatpush1.msra.mxu0 0.0
    %83 = vmatprep.subr.mxu0 0.0
    %84 = vmatpush1.msra.mxu0 0.0
    %85 = vmatprep.subr.mxu0 0.0
    %86 = vmatpush1.msra.mxu0 0.0
    %87 = vmatprep.subr.mxu0 0.0
    %88 = vmatpush1.msra.mxu0 0.0
    %89 = vmatprep.subr.mxu0 0.0
    %90 = vmatpush1.msra.mxu0 0.0
    %91 = vmatprep.subr.mxu0 0.0
    %92 = vmatpush1.msra.mxu0 0.0
    %93 = vmatprep.subr.mxu0 0.0
    %94 = vmatpush1.msra.mxu0 0.0
    %95 = vmatprep.subr.mxu0 0.0
    %96 = vmatpush1.msra.mxu0 0.0
    %97 = vmatprep.subr.mxu0 0.0
    %98 = vmatpush1.msra.mxu0 0.0
    %99 = vmatprep.subr.mxu0 0.0
    %100 = vmatpush1.msra.mxu0 0.0
    %101 = vmatprep.subr.mxu0 0.0
    %102 = vmatpush1.msra.mxu0 0.0
    %103 = vmatprep.subr.mxu0 0.0
    %104 = vmatpush1.msra.mxu0 0.0
    %105 = vmatprep.subr.mxu0 0.0
    %106 = vmatpush1.msra.mxu0 %v73
    %107 = vmatprep.subr.mxu0 0.0
    %108 = vmatpush2.msra.mxu0 0.0
    %109 = vmatprep.subr.mxu0 0.0
    %110 = vmatpush2.msra.mxu0 0.0
    %111 = vmatprep.subr.mxu0 0.0
    %112 = vmatpush2.msra.mxu0 0.0
    %113 = vmatprep.subr.mxu0 0.0
    %114 = vmatpush2.msra.mxu0 0.0
    %115 = vmatprep.subr.mxu0 0.0
    %116 = vmatpush2.msra.mxu0 0.0
    %117 = vmatprep.subr.mxu0 0.0
    %118 = vmatpush2.msra.mxu0 0.0
    %119 = vmatprep.subr.mxu0 0.0
    %120 = vmatpush2.msra.mxu0 0.0
    %121 = vmatprep.subr.mxu0 0.0
    %122 = vmatpush2.msra.mxu0 0.0
    %123 = vmatprep.subr.mxu0 0.0
    %124 = vmatpush2.msra.mxu0 0.0
    %125 = vmatprep.subr.mxu0 0.0
    %126 = vmatpush2.msra.mxu0 0.0
    %127 = vmatprep.subr.mxu0 0.0
    %128 = vmatpush2.msra.mxu0 0.0
    %129 = vmatprep.subr.mxu0 0.0
    %130 = vmatpush2.msra.mxu0 0.0
    %131 = vmatprep.subr.mxu0 0.0
    %132 = vmatpush2.msra.mxu0 0.0
    %133 = vmatprep.subr.mxu0 0.0
    %134 = vmatpush2.msra.mxu0 0.0
    %135 = vmatprep.subr.mxu0 0.0
    %136 = vmatpush2.msra.mxu0 0.0
    %137 = vmatprep.subr.mxu0 0.0
    %138 = vmatpush2.msra.mxu0 0.0
    %139 = vmatprep.mubr.f32.mxu0 0.0
    %140 = vmatmul.mubr.f32.gmra.mxu0 %v69
    %v141 = vpop.f32.mrf.mxu0
    %v142 = vadd.f32 %v65, %v141
    %v143 = vpop.f32.mrf.mxu0
    %144 = vdwg.mxu0
    %v145 = vmax.f32 %v142, 0.0
    %v146 = vld [vmem:[#allocation2] sm:$0xff]
    %v147 = vld [vmem:[#allocation2 + $0x8] sm:$0xff]
    %v148 = vld [vmem:[#allocation2 + $0x10] sm:$0xff]
    %v149 = vld [vmem:[#allocation2 + $0x18] sm:$0xff]
    %v150 = vld [vmem:[#allocation2 + $0x20] sm:$0xff]
    %v151 = vld [vmem:[#allocation2 + $0x28] sm:$0xff]
    %v152 = vld [vmem:[#allocation2 + $0x30] sm:$0xff]
    %v153 = vld [vmem:[#allocation2 + $0x38] sm:$0xff]
    %v154 = vld [vmem:[#allocation2 + $0x40] sm:$0xff]
    %v155 = vld [vmem:[#allocation2 + $0x48] sm:$0xff]
    %v156 = vld [vmem:[#allocation2 + $0x50] sm:$0xff]
    %v157 = vld [vmem:[#allocation2 + $0x58] sm:$0xff]
    %v158 = vld [vmem:[#allocation2 + $0x60] sm:$0xff]
    %v159 = vld [vmem:[#allocation2 + $0x68] sm:$0xff]
    %v160 = vld [vmem:[#allocation2 + $0x70] sm:$0xff]
    %v161 = vld [vmem:[#allocation2 + $0x78] sm:$0xff]
    %v162 = vld [vmem:[%s5] sm:$0x1]
    %v164 = vlaneseq
    %v165 = vshrl.u32 %v164, 7
    %v166 = vsub.s32 0, %v165
    %v167 = vrot.slane %v162, %v166
    %169 = vmatprep.subr.mxu0 0.0
    %170 = vmatpush1.msra.mxu0 %v161
    %171 = vmatprep.subr.mxu0 0.0
    %172 = vmatpush1.msra.mxu0 %v160
    %173 = vmatprep.subr.mxu0 0.0
    %174 = vmatpush1.msra.mxu0 %v159
    %175 = vmatprep.subr.mxu0 0.0
    %176 = vmatpush1.msra.mxu0 %v158
    %177 = vmatprep.subr.mxu0 0.0
    %178 = vmatpush1.msra.mxu0 %v157
    %179 = vmatprep.subr.mxu0 0.0
    %180 = vmatpush1.msra.mxu0 %v156
    %181 = vmatprep.subr.mxu0 0.0
    %182 = vmatpush1.msra.mxu0 %v155
    %183 = vmatprep.subr.mxu0 0.0
    %184 = vmatpush1.msra.mxu0 %v154
    %185 = vmatprep.subr.mxu0 0.0
    %186 = vmatpush1.msra.mxu0 %v153
    %187 = vmatprep.subr.mxu0 0.0
    %188 = vmatpush1.msra.mxu0 %v152
    %189 = vmatprep.subr.mxu0 0.0
    %190 = vmatpush1.msra.mxu0 %v151
    %191 = vmatprep.subr.mxu0 0.0
    %192 = vmatpush1.msra.mxu0 %v150
    %193 = vmatprep.subr.mxu0 0.0
    %194 = vmatpush1.msra.mxu0 %v149
    %195 = vmatprep.subr.mxu0 0.0
    %196 = vmatpush1.msra.mxu0 %v148
    %197 = vmatprep.subr.mxu0 0.0
    %198 = vmatpush1.msra.mxu0 %v147
    %199 = vmatprep.subr.mxu0 0.0
    %200 = vmatpush1.msra.mxu0 %v146
    %201 = vmatprep.subr.mxu0 0.0
    %202 = vmatpush2.msra.mxu0 0.0
    %203 = vmatprep.subr.mxu0 0.0
    %204 = vmatpush2.msra.mxu0 0.0
    %205 = vmatprep.subr.mxu0 0.0
    %206 = vmatpush2.msra.mxu0 0.0
    %207 = vmatprep.subr.mxu0 0.0
    %208 = vmatpush2.msra.mxu0 0.0
    %209 = vmatprep.subr.mxu0 0.0
    %210 = vmatpush2.msra.mxu0 0.0
    %211 = vmatprep.subr.mxu0 0.0
    %212 = vmatpush2.msra.mxu0 0.0
    %213 = vmatprep.subr.mxu0 0.0
    %214 = vmatpush2.msra.mxu0 0.0
    %215 = vmatprep.subr.mxu0 0.0
    %216 = vmatpush2.msra.mxu0 0.0
    %217 = vmatprep.subr.mxu0 0.0
    %218 = vmatpush2.msra.mxu0 0.0
    %219 = vmatprep.subr.mxu0 0.0
    %220 = vmatpush2.msra.mxu0 0.0
    %221 = vmatprep.subr.mxu0 0.0
    %222 = vmatpush2.msra.mxu0 0.0
    %223 = vmatprep.subr.mxu0 0.0
    %224 = vmatpush2.msra.mxu0 0.0
    %225 = vmatprep.subr.mxu0 0.0
    %226 = vmatpush2.msra.mxu0 0.0
    %227 = vmatprep.subr.mxu0 0.0
    %228 = vmatpush2.msra.mxu0 0.0
    %229 = vmatprep.subr.mxu0 0.0
    %230 = vmatpush2.msra.mxu0 0.0
    %231 = vmatprep.subr.mxu0 0.0
    %232 = vmatpush2.msra.mxu0 0.0
    %233 = vmatprep.mubr.f32.mxu0 0.0
    %234 = vmatmul.mubr.f32.gmra.mxu0 %v145
    %v235 = vpop.f32.mrf.mxu0
    %v236 = vadd.f32 %v167, %v235
    %v237 = vpop.f32.mrf.mxu0
    %238 = vdwg.mxu0
    %v239 = vmax.f32 %v236, 0.0
    %v240 = vld [vmem:[#allocation5] sm:$0xff]
    %v241 = vld [vmem:[#allocation5 + $0x8] sm:$0xff]
    %v242 = vld [vmem:[#allocation5 + $0x10] sm:$0xff]
    %v243 = vld [vmem:[#allocation5 + $0x18] sm:$0xff]
    %v244 = vld [vmem:[#allocation5 + $0x20] sm:$0xff]
    %v245 = vld [vmem:[#allocation5 + $0x28] sm:$0xff]
    %v246 = vld [vmem:[#allocation5 + $0x30] sm:$0xff]
    %v247 = vld [vmem:[#allocation5 + $0x38] sm:$0xff]
    %v248 = vld [vmem:[#allocation5 + $0x40] sm:$0xff]
    %v249 = vld [vmem:[#allocation5 + $0x48] sm:$0xff]
    %v250 = vld [vmem:[#allocation5 + $0x50] sm:$0xff]
    %v251 = vld [vmem:[#allocation5 + $0x58] sm:$0xff]
    %v252 = vld [vmem:[#allocation5 + $0x60] sm:$0xff]
    %v253 = vld [vmem:[#allocation5 + $0x68] sm:$0xff]
    %v254 = vld [vmem:[#allocation5 + $0x70] sm:$0xff]
    %v255 = vld [vmem:[#allocation5 + $0x78] sm:$0xff]
    %v256 = vld [vmem:[%s7] sm:$0x1]
    %v258 = vlaneseq
    %v259 = vshrl.u32 %v258, 7
    %v260 = vsub.s32 0, %v259
    %v261 = vrot.slane %v256, %v260
    %263 = vmatprep.subr.mxu0 0.0
    %264 = vmatpush1.msra.mxu0 %v255
    %265 = vmatprep.subr.mxu0 0.0
    %266 = vmatpush1.msra.mxu0 %v254
    %267 = vmatprep.subr.mxu0 0.0
    %268 = vmatpush1.msra.mxu0 %v253
    %269 = vmatprep.subr.mxu0 0.0
    %270 = vmatpush1.msra.mxu0 %v252
    %271 = vmatprep.subr.mxu0 0.0
    %272 = vmatpush1.msra.mxu0 %v251
    %273 = vmatprep.subr.mxu0 0.0
    %274 = vmatpush1.msra.mxu0 %v250
    %275 = vmatprep.subr.mxu0 0.0
    %276 = vmatpush1.msra.mxu0 %v249
    %277 = vmatprep.subr.mxu0 0.0
    %278 = vmatpush1.msra.mxu0 %v248
    %279 = vmatprep.subr.mxu0 0.0
    %280 = vmatpush1.msra.mxu0 %v247
    %281 = vmatprep.subr.mxu0 0.0
    %282 = vmatpush1.msra.mxu0 %v246
    %283 = vmatprep.subr.mxu0 0.0
    %284 = vmatpush1.msra.mxu0 %v245
    %285 = vmatprep.subr.mxu0 0.0
    %286 = vmatpush1.msra.mxu0 %v244
    %287 = vmatprep.subr.mxu0 0.0
    %288 = vmatpush1.msra.mxu0 %v243
    %289 = vmatprep.subr.mxu0 0.0
    %290 = vmatpush1.msra.mxu0 %v242
    %291 = vmatprep.subr.mxu0 0.0
    %292 = vmatpush1.msra.mxu0 %v241
    %293 = vmatprep.subr.mxu0 0.0
    %294 = vmatpush1.msra.mxu0 %v240
    %295 = vmatprep.subr.mxu0 0.0
    %296 = vmatpush2.msra.mxu0 0.0
    %297 = vmatprep.subr.mxu0 0.0
    %298 = vmatpush2.msra.mxu0 0.0
    %299 = vmatprep.subr.mxu0 0.0
    %300 = vmatpush2.msra.mxu0 0.0
    %301 = vmatprep.subr.mxu0 0.0
    %302 = vmatpush2.msra.mxu0 0.0
    %303 = vmatprep.subr.mxu0 0.0
    %304 = vmatpush2.msra.mxu0 0.0
    %305 = vmatprep.subr.mxu0 0.0
    %306 = vmatpush2.msra.mxu0 0.0
    %307 = vmatprep.subr.mxu0 0.0
    %308 = vmatpush2.msra.mxu0 0.0
    %309 = vmatprep.subr.mxu0 0.0
    %310 = vmatpush2.msra.mxu0 0.0
    %311 = vmatprep.subr.mxu0 0.0
    %312 = vmatpush2.msra.mxu0 0.0
    %313 = vmatprep.subr.mxu0 0.0
    %314 = vmatpush2.msra.mxu0 0.0
    %315 = vmatprep.subr.mxu0 0.0
    %316 = vmatpush2.msra.mxu0 0.0
    %317 = vmatprep.subr.mxu0 0.0
    %318 = vmatpush2.msra.mxu0 0.0
    %319 = vmatprep.subr.mxu0 0.0
    %320 = vmatpush2.msra.mxu0 0.0
    %321 = vmatprep.subr.mxu0 0.0
    %322 = vmatpush2.msra.mxu0 0.0
    %323 = vmatprep.subr.mxu0 0.0
    %324 = vmatpush2.msra.mxu0 0.0
    %325 = vmatprep.subr.mxu0 0.0
    %326 = vmatpush2.msra.mxu0 0.0
    %327 = vmatprep.mubr.f32.mxu0 0.0
    %328 = vmatmul.mubr.f32.gmra.mxu0 %v239
    %v329 = vpop.f32.mrf.mxu0
    %v330 = vadd.f32 %v261, %v329
    %v331 = vpop.f32.mrf.mxu0
    %332 = vdwg.mxu0
    %v333 = vld [vmem:[%s1] sm:$0xff]
    %vm334 = vcmp.eq.s32.totalorder %v333, 1
    %v335 = vsel %vm334, 1, 0
    %336 = vset.pattern.permute.xlu0 0
    %337 = vperm.xlu0 %336, %v335
    %v338 = vpop.permute.xlu0 %337
    %vm339 = vcmp.eq.s32.totalorder %v338, 1
    %341 = vrot.lane.b32.xlu0 %v330, 5
    %v342 = vpop.permute.xlu0 %341
    %v344 = vsel %vm339, %v330, %v342
    %vm345 = vcmp.eq.s32.totalorder %v333, 2
    %v346 = vsel %vm345, 1, 0
    %347 = vset.pattern.permute.xlu0 0
    %348 = vperm.xlu0 %347, %v346
    %v349 = vpop.permute.xlu0 %348
    %vm350 = vcmp.eq.s32.totalorder %v349, 1
    %352 = vrot.lane.b32.xlu0 %v344, 5
    %v353 = vpop.permute.xlu0 %352
    %v355 = vsel %vm350, %v330, %v353
    %357 = vrot.lane.b32.xlu0 %v355, 118
    %v358 = vpop.permute.xlu0 %357
    %vm360 = vcmask 39936
    %361 = vst.msk [vmem:[#allocation7] sm:$0xff] %vm360, %v358
    // Predicated region
    $region42: #{tpu_custom_call.1} parent=1 // pred_check
      _
    $region43: #{tpu_custom_call.1} parent=1 // pred_check_branch
      %363 = sbr.rel (0) target = $region45
    $region44: #{tpu_custom_call.1} parent=1 // pred_region
      %s365 = ssub.s32 128, 128
      %366 = vsyncadd [#allocation4], %s365
      %s368 = sshll.u32 [#allocation7], 4
      %s369 = int_to_ptr.vmem [resolvable:$true] %s368
      %371 = dma.vmem_to_hbm [thread:$0]  %s369, 128, %s8, [#allocation4]
    $region45: #{tpu_custom_call.1} parent=1 // pred_fallthru
      _
    // Predicated region
    $region46: #{tpu_custom_call.1} parent=1 // pred_check
      _
    $region47: #{tpu_custom_call.1} parent=1 // pred_check_branch
      %373 = sbr.rel (0) target = $region49
    $region48: #{tpu_custom_call.1} parent=1 // pred_region
      %374 = dma.done [#allocation4], 128
    $region49: #{tpu_custom_call.1} parent=1 // pred_fallthru
      _
    %375 = vsyncpa [#allocation3], 1
    %376 = vsyncpa [#allocation6], 1
    %377 = vsyncpa [#allocation4], 1

</llo_original>
